<compile_context>
chip_gen: v7x
topology: tpu7x:2x2x1
jax: 0.10.0
libtpu: 0.0.40
codegen_flags: <defaults>
</compile_context>

<pallas_src>
import functools

import jax
import jax.numpy as jnp
from jax.experimental import pallas as pl
from jax.experimental.pallas import tpu as pltpu


NEG_SLOPE = 0.01   # PyTorch nn.LeakyReLU default
LANE = 128         # TPU vreg lane width
SUBLANE = 8        # TPU vreg sublane count


def _leaky_relu(x):
    return jnp.where(x > 0, x, NEG_SLOPE * x)


def _round_up(x, m):
    return (x + m - 1) // m * m


def _pad2d(a, rows, cols):
    r, c = a.shape
    return jnp.pad(a, ((0, rows - r), (0, cols - c)))


def _batch_map(i):
    return (i, 0)


def _fixed_map(i):
    return (0, 0)


def actor_kernel(state_ref,
                 w1_ref, b1_ref,
                 w2_ref, b2_ref,
                 w3_ref, b3_ref,
                 w4_ref, b4_ref,
                 out_ref):
    x = state_ref[...]                                   # [tb, in_dim] (narrow, e.g. 3 lanes)

    h = jnp.dot(x, w1_ref[...], preferred_element_type=jnp.float32) + b1_ref[...]
    h = _leaky_relu(h)                                   # [tb, 128]

    h = jnp.dot(h, w2_ref[...], preferred_element_type=jnp.float32) + b2_ref[...]
    h = _leaky_relu(h)

    h = jnp.dot(h, w3_ref[...], preferred_element_type=jnp.float32) + b3_ref[...]
    h = _leaky_relu(h)

    # Output dim is 1: broadcast-multiply by the W4 row and lane-reduce (XLU)
    # instead of a 4th MXU matmul; store a narrow [tb, 1] block.
    y = jnp.sum(h * w4_ref[...], axis=-1, keepdims=True) + b4_ref[...]
    out_ref[...] = 2.0 * jnp.tanh(y)


def prepare_params(params):
    """One-time preprocessing (keep OUT of the per-step hot path).

    Pads hidden dims to 128 lanes, casts to f32, and folds W4 ([h, 1]) into a
    [1, 128] row vector for the in-kernel lane reduce. Zero padding is exact.
    """
    w1, w2, w3, w4 = (params[f"w{i}"].astype(jnp.float32) for i in range(1, 5))
    b1, b2, b3, b4 = (params[f"b{i}"].astype(jnp.float32) for i in range(1, 5))
    assert w4.shape[1] == 1, "last layer is specialized to output dim 1 (Pendulum action)"

    in_dim = w1.shape[0]
    h1 = _round_up(w1.shape[1], LANE)
    h2 = _round_up(w2.shape[1], LANE)
    h3 = _round_up(w3.shape[1], LANE)

    return {
        "w1": _pad2d(w1, in_dim, h1),   # [in_dim, 128] — input dim stays narrow
        "b1": _pad2d(b1, 1, h1),
        "w2": _pad2d(w2, h1, h2),       # [128, 128]
        "b2": _pad2d(b2, 1, h2),
        "w3": _pad2d(w3, h2, h3),       # [128, 128]
        "b3": _pad2d(b3, 1, h3),
        "w4": _pad2d(w4.T, 1, h3),      # [1, 128] row vector
        "b4": b4.reshape(1, 1),         # [1, 1]
    }


@functools.partial(jax.jit, static_argnames=("tile_b",))
def actor_forward(state, prepared, *, tile_b=1024):
    """state: [B, input_size] float32; prepared: output of `prepare_params`."""
    B, in_dim = state.shape
    state = state.astype(jnp.float32)

    # Batch tile: as large as possible (amortize per-step overhead), but if the
    # whole batch fits in one step and is big enough, split it in two so v7x
    # can shard the "parallel" axis across both TensorCores.
    tb = _round_up(min(tile_b, _round_up(B, SUBLANE)), SUBLANE)
    if B > 2 * SUBLANE and _round_up(B, tb) // tb < 2:
        tb = _round_up((B + 1) // 2, SUBLANE)
    b_pad = _round_up(B, tb)
    if b_pad != B:
        state = jnp.pad(state, ((0, b_pad - B), (0, 0)))

    out_dim = prepared["b4"].shape[1]   # == 1

    in_specs = [pl.BlockSpec((tb, in_dim), _batch_map)]   # narrow input block
    args = [state]
    for name in ("w1", "b1", "w2", "b2", "w3", "b3", "w4", "b4"):
        p = prepared[name]
        in_specs.append(pl.BlockSpec(p.shape, _fixed_map))  # whole tensor, VMEM-resident
        args.append(p)

    out = pl.pallas_call(
        actor_kernel,
        out_shape=jax.ShapeDtypeStruct((b_pad, out_dim), jnp.float32),
        grid=(b_pad // tb,),
        in_specs=in_specs,
        out_specs=pl.BlockSpec((tb, out_dim), _batch_map),   # narrow output block
        compiler_params=pltpu.CompilerParams(
            dimension_semantics=("parallel",)),
    )(*args)

    return out if b_pad == B else out[:B]


def init_params(key, input_size, hidden_size, output_size):
    """Deterministic synthetic init (uniform, like PyTorch's fan_in bound)."""
    dims = [(input_size, hidden_size),
            (hidden_size, hidden_size // 2),
            (hidden_size // 2, hidden_size // 4),
            (hidden_size // 4, output_size)]
    params = {}
    for i, (fan_in, fan_out) in enumerate(dims, start=1):
        key, kw, kb = jax.random.split(key, 3)
        bound = 1.0 / (fan_in ** 0.5)
        params[f"w{i}"] = jax.random.uniform(
            kw, (fan_in, fan_out), jnp.float32, minval=-bound, maxval=bound)
        params[f"b{i}"] = jax.random.uniform(
            kb, (1, fan_out), jnp.float32, minval=-bound, maxval=bound)
    return params


if __name__ == "__main__":
    # Pendulum-v1: observation dim = 3, action dim = 1.
    input_size, hidden_size, output_size = 3, 32, 1
    batch = 8

    key = jax.random.PRNGKey(0)
    key, kstate = jax.random.split(key)
    state = jax.random.normal(kstate, (batch, input_size), jnp.float32)
    params = init_params(key, input_size, hidden_size, output_size)

    prepared = prepare_params(params)          # one-time, outside the hot path
    out = actor_forward(state, prepared)
    out = jax.block_until_ready(out)

    # Pure-JAX reference check (unpadded math).
    def ref(x, p):
        h = x
        for i in range(1, 4):
            h = h @ p[f"w{i}"] + p[f"b{i}"]
            h = jnp.where(h > 0, h, NEG_SLOPE * h)
        return 2.0 * jnp.tanh(h @ p["w4"] + p["b4"])

    expected = ref(state, params)
    assert out.shape == (batch, output_size)
    assert jnp.allclose(out, expected, atol=1e-5, rtol=1e-5)

    print("KERNEL_OK")
</pallas_src>

<mosaic_0001>
module attributes {stable_mosaic.version = 11 : i64} {
  func.func @actor_kernel(%arg0: i32, %arg1: memref<8x3xf32, #tpu.memory_space<vmem>>, %arg2: memref<3x128xf32, #tpu.memory_space<vmem>>, %arg3: memref<1x128xf32, #tpu.memory_space<vmem>>, %arg4: memref<128x128xf32, #tpu.memory_space<vmem>>, %arg5: memref<1x128xf32, #tpu.memory_space<vmem>>, %arg6: memref<128x128xf32, #tpu.memory_space<vmem>>, %arg7: memref<1x128xf32, #tpu.memory_space<vmem>>, %arg8: memref<1x128xf32, #tpu.memory_space<vmem>>, %arg9: memref<1x1xf32, #tpu.memory_space<vmem>>, %arg10: memref<8x1xf32, #tpu.memory_space<vmem>>) attributes {dimension_semantics = [#tpu.dimension_semantics<parallel>], iteration_bounds = array<i64: 1>, scalar_prefetch = 0 : i64, scratch_operands = 0 : i64, tpu.core_type = #tpu.core_type<tc>, window_params = [{transform_indices = @transform_0, window_bounds = array<i64: 8, 3>}, {pipeline_mode = #tpu.pipeline_mode<synchronous>, transform_indices = @transform_1, window_bounds = array<i64: 3, 128>}, {pipeline_mode = #tpu.pipeline_mode<synchronous>, transform_indices = @transform_2, window_bounds = array<i64: 1, 128>}, {pipeline_mode = #tpu.pipeline_mode<synchronous>, transform_indices = @transform_3, window_bounds = array<i64: 128, 128>}, {pipeline_mode = #tpu.pipeline_mode<synchronous>, transform_indices = @transform_4, window_bounds = array<i64: 1, 128>}, {pipeline_mode = #tpu.pipeline_mode<synchronous>, transform_indices = @transform_5, window_bounds = array<i64: 128, 128>}, {pipeline_mode = #tpu.pipeline_mode<synchronous>, transform_indices = @transform_6, window_bounds = array<i64: 1, 128>}, {pipeline_mode = #tpu.pipeline_mode<synchronous>, transform_indices = @transform_7, window_bounds = array<i64: 1, 128>}, {pipeline_mode = #tpu.pipeline_mode<synchronous>, transform_indices = @transform_8, window_bounds = array<i64: 1, 1>}, {transform_indices = @transform_9, window_bounds = array<i64: 8, 1>}]} {
    %c0 = arith.constant 0 : index
    %c0_0 = arith.constant 0 : index
    %0 = vector.load %arg1[%c0, %c0_0] : memref<8x3xf32, #tpu.memory_space<vmem>>, vector<8x3xf32>
    %c0_1 = arith.constant 0 : index
    %c0_2 = arith.constant 0 : index
    %1 = vector.load %arg2[%c0_1, %c0_2] : memref<3x128xf32, #tpu.memory_space<vmem>>, vector<3x128xf32>
    %cst = arith.constant dense<0.000000e+00> : vector<8x128xf32>
    %2 = tpu.matmul %0, %1, %cst {dimension_numbers = #tpu.dot_dimension_numbers<[1], [0], [0], [1], [0, 0, 1, 1], [], []>} : vector<8x3xf32>, vector<3x128xf32>, vector<8x128xf32> -> vector<8x128xf32>
    %c0_3 = arith.constant 0 : index
    %c0_4 = arith.constant 0 : index
    %3 = vector.load %arg3[%c0_3, %c0_4] : memref<1x128xf32, #tpu.memory_space<vmem>>, vector<1x128xf32>
    %4 = vector.broadcast %3 : vector<1x128xf32> to vector<8x128xf32>
    %5 = arith.addf %2, %4 : vector<8x128xf32>
    %cst_5 = arith.constant 0.000000e+00 : f32
    %6 = vector.broadcast %cst_5 : f32 to vector<8x128xf32>
    %7 = arith.cmpf ogt, %5, %6 : vector<8x128xf32>
    %cst_6 = arith.constant 0.00999999977 : f32
    %8 = vector.broadcast %cst_6 : f32 to vector<8x128xf32>
    %9 = arith.mulf %8, %5 : vector<8x128xf32>
    %10 = arith.select %7, %5, %9 : vector<8x128xi1>, vector<8x128xf32>
    %c0_7 = arith.constant 0 : index
    %c0_8 = arith.constant 0 : index
    %11 = vector.load %arg4[%c0_7, %c0_8] : memref<128x128xf32, #tpu.memory_space<vmem>>, vector<128x128xf32>
    %cst_9 = arith.constant dense<0.000000e+00> : vector<8x128xf32>
    %12 = tpu.matmul %10, %11, %cst_9 {dimension_numbers = #tpu.dot_dimension_numbers<[1], [0], [0], [1], [0, 0, 1, 1], [], []>} : vector<8x128xf32>, vector<128x128xf32>, vector<8x128xf32> -> vector<8x128xf32>
    %c0_10 = arith.constant 0 : index
    %c0_11 = arith.constant 0 : index
    %13 = vector.load %arg5[%c0_10, %c0_11] : memref<1x128xf32, #tpu.memory_space<vmem>>, vector<1x128xf32>
    %14 = vector.broadcast %13 : vector<1x128xf32> to vector<8x128xf32>
    %15 = arith.addf %12, %14 : vector<8x128xf32>
    %cst_12 = arith.constant 0.000000e+00 : f32
    %16 = vector.broadcast %cst_12 : f32 to vector<8x128xf32>
    %17 = arith.cmpf ogt, %15, %16 : vector<8x128xf32>
    %cst_13 = arith.constant 0.00999999977 : f32
    %18 = vector.broadcast %cst_13 : f32 to vector<8x128xf32>
    %19 = arith.mulf %18, %15 : vector<8x128xf32>
    %20 = arith.select %17, %15, %19 : vector<8x128xi1>, vector<8x128xf32>
    %c0_14 = arith.constant 0 : index
    %c0_15 = arith.constant 0 : index
    %21 = vector.load %arg6[%c0_14, %c0_15] : memref<128x128xf32, #tpu.memory_space<vmem>>, vector<128x128xf32>
    %cst_16 = arith.constant dense<0.000000e+00> : vector<8x128xf32>
    %22 = tpu.matmul %20, %21, %cst_16 {dimension_numbers = #tpu.dot_dimension_numbers<[1], [0], [0], [1], [0, 0, 1, 1], [], []>} : vector<8x128xf32>, vector<128x128xf32>, vector<8x128xf32> -> vector<8x128xf32>
    %c0_17 = arith.constant 0 : index
    %c0_18 = arith.constant 0 : index
    %23 = vector.load %arg7[%c0_17, %c0_18] : memref<1x128xf32, #tpu.memory_space<vmem>>, vector<1x128xf32>
    %24 = vector.broadcast %23 : vector<1x128xf32> to vector<8x128xf32>
    %25 = arith.addf %22, %24 : vector<8x128xf32>
    %cst_19 = arith.constant 0.000000e+00 : f32
    %26 = vector.broadcast %cst_19 : f32 to vector<8x128xf32>
    %27 = arith.cmpf ogt, %25, %26 : vector<8x128xf32>
    %cst_20 = arith.constant 0.00999999977 : f32
    %28 = vector.broadcast %cst_20 : f32 to vector<8x128xf32>
    %29 = arith.mulf %28, %25 : vector<8x128xf32>
    %30 = arith.select %27, %25, %29 : vector<8x128xi1>, vector<8x128xf32>
    %c0_21 = arith.constant 0 : index
    %c0_22 = arith.constant 0 : index
    %31 = vector.load %arg8[%c0_21, %c0_22] : memref<1x128xf32, #tpu.memory_space<vmem>>, vector<1x128xf32>
    %32 = vector.broadcast %31 : vector<1x128xf32> to vector<8x128xf32>
    %33 = arith.mulf %30, %32 : vector<8x128xf32>
    %cst_23 = arith.constant dense<0.000000e+00> : vector<8xf32>
    %34 = vector.multi_reduction <add>, %33, %cst_23 [1] : vector<8x128xf32> to vector<8xf32>
    %35 = vector.shape_cast %34 : vector<8xf32> to vector<8x1xf32>
    %c0_24 = arith.constant 0 : index
    %c0_25 = arith.constant 0 : index
    %36 = vector.load %arg9[%c0_24, %c0_25] : memref<1x1xf32, #tpu.memory_space<vmem>>, vector<1x1xf32>
    %37 = vector.broadcast %36 : vector<1x1xf32> to vector<8x1xf32>
    %38 = arith.addf %35, %37 : vector<8x1xf32>
    %39 = math.tanh %38 : vector<8x1xf32>
    %cst_26 = arith.constant 2.000000e+00 : f32
    %40 = vector.broadcast %cst_26 : f32 to vector<8x1xf32>
    %41 = arith.mulf %40, %39 : vector<8x1xf32>
    %c0_27 = arith.constant 0 : index
    %c0_28 = arith.constant 0 : index
    %42 = vector.load %arg10[%c0_27, %c0_28] : memref<8x1xf32, #tpu.memory_space<vmem>>, vector<8x1xf32>
    tpu.vector_store %arg10[%c0_27, %c0_28], %41 {strides = array<i32>} : memref<8x1xf32, #tpu.memory_space<vmem>>, vector<8x1xf32>,
    return
  }
  func.func @transform_0(%arg0: i32) -> (i32, i32) {
    %c0_i32 = arith.constant 0 : i32
    %c0_i32_0 = arith.constant 0 : i32
    return %arg0, %c0_i32 : i32, i32
  }
  func.func @transform_1(%arg0: i32) -> (i32, i32) {
    %c0_i32 = arith.constant 0 : i32
    %c0_i32_0 = arith.constant 0 : i32
    %c0_i32_1 = arith.constant 0 : i32
    return %c0_i32, %c0_i32_0 : i32, i32
  }
  func.func @transform_2(%arg0: i32) -> (i32, i32) {
    %c0_i32 = arith.constant 0 : i32
    %c0_i32_0 = arith.constant 0 : i32
    %c0_i32_1 = arith.constant 0 : i32
    return %c0_i32, %c0_i32_0 : i32, i32
  }
  func.func @transform_3(%arg0: i32) -> (i32, i32) {
    %c0_i32 = arith.constant 0 : i32
    %c0_i32_0 = arith.constant 0 : i32
    %c0_i32_1 = arith.constant 0 : i32
    return %c0_i32, %c0_i32_0 : i32, i32
  }
  func.func @transform_4(%arg0: i32) -> (i32, i32) {
    %c0_i32 = arith.constant 0 : i32
    %c0_i32_0 = arith.constant 0 : i32
    %c0_i32_1 = arith.constant 0 : i32
    return %c0_i32, %c0_i32_0 : i32, i32
  }
  func.func @transform_5(%arg0: i32) -> (i32, i32) {
    %c0_i32 = arith.constant 0 : i32
    %c0_i32_0 = arith.constant 0 : i32
    %c0_i32_1 = arith.constant 0 : i32
    return %c0_i32, %c0_i32_0 : i32, i32
  }
  func.func @transform_6(%arg0: i32) -> (i32, i32) {
    %c0_i32 = arith.constant 0 : i32
    %c0_i32_0 = arith.constant 0 : i32
    %c0_i32_1 = arith.constant 0 : i32
    return %c0_i32, %c0_i32_0 : i32, i32
  }
  func.func @transform_7(%arg0: i32) -> (i32, i32) {
    %c0_i32 = arith.constant 0 : i32
    %c0_i32_0 = arith.constant 0 : i32
    %c0_i32_1 = arith.constant 0 : i32
    return %c0_i32, %c0_i32_0 : i32, i32
  }
  func.func @transform_8(%arg0: i32) -> (i32, i32) {
    %c0_i32 = arith.constant 0 : i32
    %c0_i32_0 = arith.constant 0 : i32
    %c0_i32_1 = arith.constant 0 : i32
    return %c0_i32, %c0_i32_0 : i32, i32
  }
  func.func @transform_9(%arg0: i32) -> (i32, i32) {
    %c0_i32 = arith.constant 0 : i32
    %c0_i32_0 = arith.constant 0 : i32
    return %arg0, %c0_i32 : i32, i32
  }
}

</mosaic_0001>

<llo_original>
// kernel: actor_forward.1
$region0: #{actor_forward.1}
  #allocation0 [shape = 'u32[]', space=smem, size = 0x4, offset = 0x4, fixed_abs, tag = 'smem constant byte address 0x4 - core index']
  #allocation1 [shape = 'u32[144,128]{1,0:T(1,128)}', space=vmem, size = 0x12000, scoped, tag = 'internal scratch']
  #allocation2 [shape = 'f32[1,1]{1,0:T(1,128)S(1)}', space=vmem, size = 0x200, scoped, tag = 'scoped memory for actor_forward.1']
  %s0 = inlined_call_operand.vmem [shape: f32[8,3], index: 0, kind: input, shape index: {}]
  %s1 = inlined_call_operand.vmem [shape: f32[3,128], index: 1, kind: input, shape index: {}]
  %s2 = inlined_call_operand.vmem [shape: f32[1,128], index: 2, kind: input, shape index: {}]
  %s3 = inlined_call_operand.hbm [shape: f32[128,128], index: 3, kind: input, shape index: {}]
  %s4 = inlined_call_operand.vmem [shape: f32[1,128], index: 4, kind: input, shape index: {}]
  %s5 = inlined_call_operand.hbm [shape: f32[128,128], index: 5, kind: input, shape index: {}]
  %s6 = inlined_call_operand.vmem [shape: f32[1,128], index: 6, kind: input, shape index: {}]
  %s7 = inlined_call_operand.vmem [shape: f32[1,128], index: 7, kind: input, shape index: {}]
  %s8 = inlined_call_operand.<no memory space> [shape: f32[1,1], index: 8, kind: input, shape index: {}]
  %s9 = inlined_call_operand.vmem [shape: f32[8,1], index: 9, kind: output, shape index: {}]
  %s10 = sld [smem:[#allocation0]]
  $region54: #{actor_forward.1} parent=0
    _
  %s12 = ssub.s32 1, %s10
  %s13 = scalar_select 0, %s12, %s10
  %v14 = vstv %s8
  %15 = vst [vmem:[#allocation2] sm:$0x1] %v14
  $region1: #{actor_forward.1} parent=0
    #allocation3 [shape = 'u8[65536]{0}', space=vmem, size = 0x10000, scoped, tag = 'input window, operand 3, single buffered']
    #allocation4 [shape = 's32[1]{0}', space=sflag, size = 0x4, scoped, tag = 'scoped memory for actor_forward.1']
    #allocation5 [shape = 'u8[65536]{0}', space=vmem, size = 0x10000, scoped, tag = 'input window, operand 5, single buffered']
    #allocation6 [shape = 's32[1]{0}', space=sflag, size = 0x4, scoped, tag = 'scoped memory for actor_forward.1']
    %16 = vsyncpa [#allocation4], 0
    %17 = vsyncpa [#allocation6], 0
    // Predicated region
    $region2: #{actor_forward.1} parent=1 // pred_check
      _
    $region3: #{actor_forward.1} parent=1 // pred_check_branch
      %19 = sbr.rel (0) target = $region5
    $region4: #{actor_forward.1} parent=1 // pred_region
      _
    $region5: #{actor_forward.1} parent=1 // pred_fallthru
      _
    // Predicated region
    $region6: #{actor_forward.1} parent=1 // pred_check
      _
    $region7: #{actor_forward.1} parent=1 // pred_check_branch
      %21 = sbr.rel (0) target = $region9
    $region8: #{actor_forward.1} parent=1 // pred_region
      _
    $region9: #{actor_forward.1} parent=1 // pred_fallthru
      _
    // Predicated region
    $region10: #{actor_forward.1} parent=1 // pred_check
      _
    $region11: #{actor_forward.1} parent=1 // pred_check_branch
      %23 = sbr.rel (0) target = $region13
    $region12: #{actor_forward.1} parent=1 // pred_region
      _
    $region13: #{actor_forward.1} parent=1 // pred_fallthru
      _
    // Predicated region
    $region14: #{actor_forward.1} parent=1 // pred_check
      _
    $region15: #{actor_forward.1} parent=1 // pred_check_branch
      %25 = sbr.rel (0) target = $region17
    $region16: #{actor_forward.1} parent=1 // pred_region
      %s27 = ssub.s32 2048, 2048
      %28 = vsyncadd [#allocation4], %s27
      %s29 = sshll.u32 [#allocation3], 4
      %s30 = int_to_ptr.vmem [resolvable:$true] %s29
      %35 = dma.hbm_to_vmem [thread:$0]  %s3, 2048, %s30, [#allocation4], 128, 128, 8
    $region17: #{actor_forward.1} parent=1 // pred_fallthru
      _
    // Predicated region
    $region18: #{actor_forward.1} parent=1 // pred_check
      _
    $region19: #{actor_forward.1} parent=1 // pred_check_branch
      %37 = sbr.rel (0) target = $region21
    $region20: #{actor_forward.1} parent=1 // pred_region
      _
    $region21: #{actor_forward.1} parent=1 // pred_fallthru
      _
    // Predicated region
    $region22: #{actor_forward.1} parent=1 // pred_check
      _
    $region23: #{actor_forward.1} parent=1 // pred_check_branch
      %39 = sbr.rel (0) target = $region25
    $region24: #{actor_forward.1} parent=1 // pred_region
      %s41 = ssub.s32 2048, 2048
      %42 = vsyncadd [#allocation6], %s41
      %s43 = sshll.u32 [#allocation5], 4
      %s44 = int_to_ptr.vmem [resolvable:$true] %s43
      %49 = dma.hbm_to_vmem [thread:$0]  %s5, 2048, %s44, [#allocation6], 128, 128, 8
    $region25: #{actor_forward.1} parent=1 // pred_fallthru
      _
    // Predicated region
    $region26: #{actor_forward.1} parent=1 // pred_check
      _
    $region27: #{actor_forward.1} parent=1 // pred_check_branch
      %51 = sbr.rel (0) target = $region29
    $region28: #{actor_forward.1} parent=1 // pred_region
      _
    $region29: #{actor_forward.1} parent=1 // pred_fallthru
      _
    // Predicated region
    $region30: #{actor_forward.1} parent=1 // pred_check
      _
    $region31: #{actor_forward.1} parent=1 // pred_check_branch
      %53 = sbr.rel (0) target = $region33
    $region32: #{actor_forward.1} parent=1 // pred_region
      _
    $region33: #{actor_forward.1} parent=1 // pred_fallthru
      _
    // Predicated region
    $region34: #{actor_forward.1} parent=1 // pred_check
      _
    $region35: #{actor_forward.1} parent=1 // pred_check_branch
      %55 = sbr.rel (0) target = $region37
    $region36: #{actor_forward.1} parent=1 // pred_region
      _
    $region37: #{actor_forward.1} parent=1 // pred_fallthru
      _
    // Predicated region
    $region38: #{actor_forward.1} parent=1 // pred_check
      _
    $region39: #{actor_forward.1} parent=1 // pred_check_branch
      %57 = sbr.rel (0) target = $region41
    $region40: #{actor_forward.1} parent=1 // pred_region
      %58 = dma.done [#allocation4], 2048
    $region41: #{actor_forward.1} parent=1 // pred_fallthru
      _
    // Predicated region
    $region42: #{actor_forward.1} parent=1 // pred_check
      _
    $region43: #{actor_forward.1} parent=1 // pred_check_branch
      %60 = sbr.rel (0) target = $region45
    $region44: #{actor_forward.1} parent=1 // pred_region
      %61 = dma.done [#allocation6], 2048
    $region45: #{actor_forward.1} parent=1 // pred_fallthru
      _
    %v62 = vld [vmem:[%s0] sm:$0xff]
    %v63 = vld [vmem:[%s1] sm:$0x7]
    %v64 = vld [vmem:[%s2] sm:$0x1]
    %v66 = vlaneseq
    %v67 = vshrl.u32 %v66, 7
    %v68 = vsub.s32 0, %v67
    %v69 = vrot.slane %v64, %v68
    %vm71 = vcmask 23552
    %v73 = vsel %vm71, %v62, 0
    %vm75 = vcmask 1042432
    %v77 = vsel %vm75, %v63, 0
    %79 = vmatprep.subr.mxu0 0.0
    %80 = vmatpush1.msra.mxu0 %v77
    %81 = vmatprep.subr.mxu0 0.0
    %82 = vmatpush1.msra.mxu0 0.0
    %83 = vmatprep.subr.mxu0 0.0
    %84 = vmatpush1.msra.mxu0 0.0
    %85 = vmatprep.subr.mxu0 0.0
    %86 = vmatpush1.msra.mxu0 0.0
    %87 = vmatprep.subr.mxu0 0.0
    %88 = vmatpush1.msra.mxu0 0.0
    %89 = vmatprep.subr.mxu0 0.0
    %90 = vmatpush1.msra.mxu0 0.0
    %91 = vmatprep.subr.mxu0 0.0
    %92 = vmatpush1.msra.mxu0 0.0
    %93 = vmatprep.subr.mxu0 0.0
    %94 = vmatpush1.msra.mxu0 0.0
    %95 = vmatprep.subr.mxu0 0.0
    %96 = vmatpush1.msra.mxu0 0.0
    %97 = vmatprep.subr.mxu0 0.0
    %98 = vmatpush1.msra.mxu0 0.0
    %99 = vmatprep.subr.mxu0 0.0
    %100 = vmatpush1.msra.mxu0 0.0
    %101 = vmatprep.subr.mxu0 0.0
    %102 = vmatpush1.msra.mxu0 0.0
    %103 = vmatprep.subr.mxu0 0.0
    %104 = vmatpush1.msra.mxu0 0.0
    %105 = vmatprep.subr.mxu0 0.0
    %106 = vmatpush1.msra.mxu0 0.0
    %107 = vmatprep.subr.mxu0 0.0
    %108 = vmatpush1.msra.mxu0 0.0
    %109 = vmatprep.subr.mxu0 0.0
    %110 = vmatpush1.msra.mxu0 0.0
    %111 = vmatprep.subr.mxu0 0.0
    %112 = vmatpush1.msra.mxu0 0.0
    %113 = vmatprep.subr.mxu0 0.0
    %114 = vmatpush1.msra.mxu0 0.0
    %115 = vmatprep.subr.mxu0 0.0
    %116 = vmatpush1.msra.mxu0 0.0
    %117 = vmatprep.subr.mxu0 0.0
    %118 = vmatpush1.msra.mxu0 0.0
    %119 = vmatprep.subr.mxu0 0.0
    %120 = vmatpush1.msra.mxu0 0.0
    %121 = vmatprep.subr.mxu0 0.0
    %122 = vmatpush1.msra.mxu0 0.0
    %123 = vmatprep.subr.mxu0 0.0
    %124 = vmatpush1.msra.mxu0 0.0
    %125 = vmatprep.subr.mxu0 0.0
    %126 = vmatpush1.msra.mxu0 0.0
    %127 = vmatprep.subr.mxu0 0.0
    %128 = vmatpush1.msra.mxu0 0.0
    %129 = vmatprep.subr.mxu0 0.0
    %130 = vmatpush1.msra.mxu0 0.0
    %131 = vmatprep.subr.mxu0 0.0
    %132 = vmatpush1.msra.mxu0 0.0
    %133 = vmatprep.subr.mxu0 0.0
    %134 = vmatpush1.msra.mxu0 0.0
    %135 = vmatprep.subr.mxu0 0.0
    %136 = vmatpush1.msra.mxu0 0.0
    %137 = vmatprep.subr.mxu0 0.0
    %138 = vmatpush1.msra.mxu0 0.0
    %139 = vmatprep.subr.mxu0 0.0
    %140 = vmatpush1.msra.mxu0 0.0
    %141 = vmatprep.subr.mxu0 0.0
    %142 = vmatpush1.msra.mxu0 0.0
    %143 = vmatprep.mubr.f32.mxu0 0.0
    %144 = vmatmul.mubr.f32.gmra.mrb[0].mxu0 %v73
    %v145 = vpop.f32.mrb[0].mxu0
    %v146 = vadd.f32 %v69, %v145
    %v147 = vpop.f32.mrb[0].mxu0
    %148 = vdwg.mxu0
    %vm149 = vcmp.gt.f32.partialorder %v146, 0.0
    %v150 = vmul.f32 %v146, 0.01
    %v151 = vsel %vm149, %v146, %v150
    %v152 = vld [vmem:[#allocation3] sm:$0xff]
    %v153 = vld [vmem:[#allocation3 + $0x8] sm:$0xff]
    %v154 = vld [vmem:[#allocation3 + $0x10] sm:$0xff]
    %v155 = vld [vmem:[#allocation3 + $0x18] sm:$0xff]
    %v156 = vld [vmem:[#allocation3 + $0x20] sm:$0xff]
    %v157 = vld [vmem:[#allocation3 + $0x28] sm:$0xff]
    %v158 = vld [vmem:[#allocation3 + $0x30] sm:$0xff]
    %v159 = vld [vmem:[#allocation3 + $0x38] sm:$0xff]
    %v160 = vld [vmem:[#allocation3 + $0x40] sm:$0xff]
    %v161 = vld [vmem:[#allocation3 + $0x48] sm:$0xff]
    %v162 = vld [vmem:[#allocation3 + $0x50] sm:$0xff]
    %v163 = vld [vmem:[#allocation3 + $0x58] sm:$0xff]
    %v164 = vld [vmem:[#allocation3 + $0x60] sm:$0xff]
    %v165 = vld [vmem:[#allocation3 + $0x68] sm:$0xff]
    %v166 = vld [vmem:[#allocation3 + $0x70] sm:$0xff]
    %v167 = vld [vmem:[#allocation3 + $0x78] sm:$0xff]
    %v168 = vld [vmem:[%s4] sm:$0x1]
    %v170 = vlaneseq
    %v171 = vshrl.u32 %v170, 7
    %v172 = vsub.s32 0, %v171
    %v173 = vrot.slane %v168, %v172
    %175 = vmatprep.subr.mxu0 0.0
    %176 = vmatpush1.msra.mxu0 %v152
    %177 = vmatprep.subr.mxu0 0.0
    %178 = vmatpush1.msra.mxu0 %v153
    %179 = vmatprep.subr.mxu0 0.0
    %180 = vmatpush1.msra.mxu0 %v154
    %181 = vmatprep.subr.mxu0 0.0
    %182 = vmatpush1.msra.mxu0 %v155
    %183 = vmatprep.subr.mxu0 0.0
    %184 = vmatpush1.msra.mxu0 %v156
    %185 = vmatprep.subr.mxu0 0.0
    %186 = vmatpush1.msra.mxu0 %v157
    %187 = vmatprep.subr.mxu0 0.0
    %188 = vmatpush1.msra.mxu0 %v158
    %189 = vmatprep.subr.mxu0 0.0
    %190 = vmatpush1.msra.mxu0 %v159
    %191 = vmatprep.subr.mxu0 0.0
    %192 = vmatpush1.msra.mxu0 %v160
    %193 = vmatprep.subr.mxu0 0.0
    %194 = vmatpush1.msra.mxu0 %v161
    %195 = vmatprep.subr.mxu0 0.0
    %196 = vmatpush1.msra.mxu0 %v162
    %197 = vmatprep.subr.mxu0 0.0
    %198 = vmatpush1.msra.mxu0 %v163
    %199 = vmatprep.subr.mxu0 0.0
    %200 = vmatpush1.msra.mxu0 %v164
    %201 = vmatprep.subr.mxu0 0.0
    %202 = vmatpush1.msra.mxu0 %v165
    %203 = vmatprep.subr.mxu0 0.0
    %204 = vmatpush1.msra.mxu0 %v166
    %205 = vmatprep.subr.mxu0 0.0
    %206 = vmatpush1.msra.mxu0 %v167
    %207 = vmatprep.subr.mxu0 0.0
    %208 = vmatpush1.msra.mxu0 0.0
    %209 = vmatprep.subr.mxu0 0.0
    %210 = vmatpush1.msra.mxu0 0.0
    %211 = vmatprep.subr.mxu0 0.0
    %212 = vmatpush1.msra.mxu0 0.0
    %213 = vmatprep.subr.mxu0 0.0
    %214 = vmatpush1.msra.mxu0 0.0
    %215 = vmatprep.subr.mxu0 0.0
    %216 = vmatpush1.msra.mxu0 0.0
    %217 = vmatprep.subr.mxu0 0.0
    %218 = vmatpush1.msra.mxu0 0.0
    %219 = vmatprep.subr.mxu0 0.0
    %220 = vmatpush1.msra.mxu0 0.0
    %221 = vmatprep.subr.mxu0 0.0
    %222 = vmatpush1.msra.mxu0 0.0
    %223 = vmatprep.subr.mxu0 0.0
    %224 = vmatpush1.msra.mxu0 0.0
    %225 = vmatprep.subr.mxu0 0.0
    %226 = vmatpush1.msra.mxu0 0.0
    %227 = vmatprep.subr.mxu0 0.0
    %228 = vmatpush1.msra.mxu0 0.0
    %229 = vmatprep.subr.mxu0 0.0
    %230 = vmatpush1.msra.mxu0 0.0
    %231 = vmatprep.subr.mxu0 0.0
    %232 = vmatpush1.msra.mxu0 0.0
    %233 = vmatprep.subr.mxu0 0.0
    %234 = vmatpush1.msra.mxu0 0.0
    %235 = vmatprep.subr.mxu0 0.0
    %236 = vmatpush1.msra.mxu0 0.0
    %237 = vmatprep.subr.mxu0 0.0
    %238 = vmatpush1.msra.mxu0 0.0
    %239 = vmatprep.mubr.f32.mxu0 0.0
    %240 = vmatmul.mubr.f32.gmra.mrb[0].mxu0 %v151
    %v241 = vpop.f32.mrb[0].mxu0
    %v242 = vadd.f32 %v173, %v241
    %v243 = vpop.f32.mrb[0].mxu0
    %244 = vdwg.mxu0
    %vm245 = vcmp.gt.f32.partialorder %v242, 0.0
    %v246 = vmul.f32 %v242, 0.01
    %v247 = vsel %vm245, %v242, %v246
    %v248 = vld [vmem:[#allocation5] sm:$0xff]
    %v249 = vld [vmem:[#allocation5 + $0x8] sm:$0xff]
    %v250 = vld [vmem:[#allocation5 + $0x10] sm:$0xff]
    %v251 = vld [vmem:[#allocation5 + $0x18] sm:$0xff]
    %v252 = vld [vmem:[#allocation5 + $0x20] sm:$0xff]
    %v253 = vld [vmem:[#allocation5 + $0x28] sm:$0xff]
    %v254 = vld [vmem:[#allocation5 + $0x30] sm:$0xff]
    %v255 = vld [vmem:[#allocation5 + $0x38] sm:$0xff]
    %v256 = vld [vmem:[#allocation5 + $0x40] sm:$0xff]
    %v257 = vld [vmem:[#allocation5 + $0x48] sm:$0xff]
    %v258 = vld [vmem:[#allocation5 + $0x50] sm:$0xff]
    %v259 = vld [vmem:[#allocation5 + $0x58] sm:$0xff]
    %v260 = vld [vmem:[#allocation5 + $0x60] sm:$0xff]
    %v261 = vld [vmem:[#allocation5 + $0x68] sm:$0xff]
    %v262 = vld [vmem:[#allocation5 + $0x70] sm:$0xff]
    %v263 = vld [vmem:[#allocation5 + $0x78] sm:$0xff]
    %v264 = vld [vmem:[%s6] sm:$0x1]
    %v266 = vlaneseq
    %v267 = vshrl.u32 %v266, 7
    %v268 = vsub.s32 0, %v267
    %v269 = vrot.slane %v264, %v268
    %271 = vmatprep.subr.mxu0 0.0
    %272 = vmatpush1.msra.mxu0 %v248
    %273 = vmatprep.subr.mxu0 0.0
    %274 = vmatpush1.msra.mxu0 %v249
    %275 = vmatprep.subr.mxu0 0.0
    %276 = vmatpush1.msra.mxu0 %v250
    %277 = vmatprep.subr.mxu0 0.0
    %278 = vmatpush1.msra.mxu0 %v251
    %279 = vmatprep.subr.mxu0 0.0
    %280 = vmatpush1.msra.mxu0 %v252
    %281 = vmatprep.subr.mxu0 0.0
    %282 = vmatpush1.msra.mxu0 %v253
    %283 = vmatprep.subr.mxu0 0.0
    %284 = vmatpush1.msra.mxu0 %v254
    %285 = vmatprep.subr.mxu0 0.0
    %286 = vmatpush1.msra.mxu0 %v255
    %287 = vmatprep.subr.mxu0 0.0
    %288 = vmatpush1.msra.mxu0 %v256
    %289 = vmatprep.subr.mxu0 0.0
    %290 = vmatpush1.msra.mxu0 %v257
    %291 = vmatprep.subr.mxu0 0.0
    %292 = vmatpush1.msra.mxu0 %v258
    %293 = vmatprep.subr.mxu0 0.0
    %294 = vmatpush1.msra.mxu0 %v259
    %295 = vmatprep.subr.mxu0 0.0
    %296 = vmatpush1.msra.mxu0 %v260
    %297 = vmatprep.subr.mxu0 0.0
    %298 = vmatpush1.msra.mxu0 %v261
    %299 = vmatprep.subr.mxu0 0.0
    %300 = vmatpush1.msra.mxu0 %v262
    %301 = vmatprep.subr.mxu0 0.0
    %302 = vmatpush1.msra.mxu0 %v263
    %303 = vmatprep.subr.mxu0 0.0
    %304 = vmatpush1.msra.mxu0 0.0
    %305 = vmatprep.subr.mxu0 0.0
    %306 = vmatpush1.msra.mxu0 0.0
    %307 = vmatprep.subr.mxu0 0.0
    %308 = vmatpush1.msra.mxu0 0.0
    %309 = vmatprep.subr.mxu0 0.0
    %310 = vmatpush1.msra.mxu0 0.0
    %311 = vmatprep.subr.mxu0 0.0
    %312 = vmatpush1.msra.mxu0 0.0
    %313 = vmatprep.subr.mxu0 0.0
    %314 = vmatpush1.msra.mxu0 0.0
    %315 = vmatprep.subr.mxu0 0.0
    %316 = vmatpush1.msra.mxu0 0.0
    %317 = vmatprep.subr.mxu0 0.0
    %318 = vmatpush1.msra.mxu0 0.0
    %319 = vmatprep.subr.mxu0 0.0
    %320 = vmatpush1.msra.mxu0 0.0
    %321 = vmatprep.subr.mxu0 0.0
    %322 = vmatpush1.msra.mxu0 0.0
    %323 = vmatprep.subr.mxu0 0.0
    %324 = vmatpush1.msra.mxu0 0.0
    %325 = vmatprep.subr.mxu0 0.0
    %326 = vmatpush1.msra.mxu0 0.0
    %327 = vmatprep.subr.mxu0 0.0
    %328 = vmatpush1.msra.mxu0 0.0
    %329 = vmatprep.subr.mxu0 0.0
    %330 = vmatpush1.msra.mxu0 0.0
    %331 = vmatprep.subr.mxu0 0.0
    %332 = vmatpush1.msra.mxu0 0.0
    %333 = vmatprep.subr.mxu0 0.0
    %334 = vmatpush1.msra.mxu0 0.0
    %335 = vmatprep.mubr.f32.mxu0 0.0
    %336 = vmatmul.mubr.f32.gmra.mrb[0].mxu0 %v247
    %v337 = vpop.f32.mrb[0].mxu0
    %v338 = vadd.f32 %v269, %v337
    %v339 = vpop.f32.mrb[0].mxu0
    %340 = vdwg.mxu0
    %vm341 = vcmp.gt.f32.partialorder %v338, 0.0
    %v342 = vmul.f32 %v338, 0.01
    %v343 = vsel %vm341, %v338, %v342
    %v344 = vld [vmem:[%s7] sm:$0x1]
    %v346 = vlaneseq
    %v347 = vshrl.u32 %v346, 7
    %v348 = vsub.s32 0, %v347
    %v349 = vrot.slane %v344, %v348
    %v351 = vmul.f32 %v343, %v349
    %352 = vadd.xlane.f32.xlu0 %v351
    %v353 = vpop.xlane.xlu0 %352
    %v354 = vld [vmem:[#allocation2] sm:$0x1]
    %v356 = vlaneseq
    %v357 = vshrl.u32 %v356, 7
    %v358 = vsub.s32 0, %v357
    %v359 = vrot.slane %v354, %v358
    %v361 = vadd.f32 %v353, %v359
    %v362 = vtanh.pop %v361
    %v363 = vmul.f32 %v362, 2.0
    %vm364 = vcmask 7168
    %365 = vst.msk [vmem:[%s9] sm:$0xff] %vm364, %v363
    // Predicated region
    $region46: #{actor_forward.1} parent=1 // pred_check
      _
    $region47: #{actor_forward.1} parent=1 // pred_check_branch
      %367 = sbr.rel (0) target = $region49
    $region48: #{actor_forward.1} parent=1 // pred_region
      _
    $region49: #{actor_forward.1} parent=1 // pred_fallthru
      _
    // Predicated region
    $region50: #{actor_forward.1} parent=1 // pred_check
      _
    $region51: #{actor_forward.1} parent=1 // pred_check_branch
      %369 = sbr.rel (0) target = $region53
    $region52: #{actor_forward.1} parent=1 // pred_region
      _
    $region53: #{actor_forward.1} parent=1 // pred_fallthru
      _
    %370 = vsyncpa [#allocation4], 1
    %371 = vsyncpa [#allocation6], 1

</llo_original>
